<compile_context>
chip_gen: v5e
topology: v5e:2x2
jax: 0.10.0
libtpu: 0.0.40
codegen_flags: <defaults>
</compile_context>

<pallas_src>
import jax
import jax.numpy as jnp
from jax import lax
from jax.experimental import pallas as pl
from jax.experimental.pallas import tpu as pltpu


def _round_up(x, m):
    return ((x + m - 1) // m) * m


def _g_spa_kernel(x_ref, m_ref, o_ref):
    # x_ref: (B, V, C)  slab of B (batch, frame) slices, channels-last
    # m_ref: (C, C)     fused weight  M = W1^T @ W2
    # o_ref: (B, V*V)   lane-dense softmax(x M x^T) for this slab
    B, V, C = x_ref.shape
    x = x_ref[...]                                             # (B, V, C)

    # Projection: one tall MXU matmul (B*V, C) @ (C, C), f32 accumulate.
    xm = jnp.dot(x.reshape(B * V, C), m_ref[...],
                 preferred_element_type=jnp.float32)           # (B*V, C) f32
    # NOTE: in bf16 mode this cast adds one rounding step on xm before the
    # score matmul (MXU wants matching operand dtypes); covered by bf16 tol.
    xm = xm.reshape(B, V, C).astype(x.dtype)

    # Scores: batched contraction over channels (batch dim leading, contract
    # trailing -> MXU-native, no materialized transpose).
    # s[b] = xm[b] @ x[b]^T == x[b] @ M @ x[b]^T
    s = lax.dot_general(
        xm, x,
        dimension_numbers=(((2,), (2,)), ((0,), (0,))),
        preferred_element_type=jnp.float32)                    # (B, V, V) f32

    # Numerically stable softmax over the last axis, kept in f32.
    s_max = jnp.max(s, axis=-1, keepdims=True)
    e = jnp.exp(s - s_max)
    denom = jnp.sum(e, axis=-1, keepdims=True)
    p = e * pl.reciprocal(denom, approx=True)   # EUP vrcp; rows sum to 1±~1e-3

    # Lane-dense store: last dim V*V (multiple of 128 for typical V).
    o_ref[...] = p.reshape(B, V * V).astype(o_ref.dtype)


def _pick_block_bt(nt, v, c, in_itemsize, out_itemsize, *,
                   byte_budget=8 << 20, min_steps=2):
    """Frames per grid step, sized purely for DMA / per-step-overhead
    amortization (MXU utilization is irrecoverably low at these channel
    counts and irrelevant -- the kernel is memory-bound).

    Targets ~byte_budget bytes of double-buffered per-step I/O plus f32
    intermediates (counting lane padding), keeps >= min_steps grid iterations
    so both v7x TensorCores get work, and keeps the output block's sublane
    dim a legal multiple of 8 (or the full axis for tiny problems)."""
    c_pad = _round_up(max(c, 1), 128)            # lane padding of the x tile
    vv_pad = _round_up(v * v, 128)               # lane padding of the out tile
    per_frame = (2 * v * c_pad * in_itemsize     # x tile, double-buffered
                 + 2 * vv_pad * out_itemsize     # out tile, double-buffered
                 + v * c_pad * 4                 # xm (f32)
                 + 2 * vv_pad * 4)               # s + p (f32)
    bt = max(1, byte_budget // per_frame)
    # >= min_steps grid iterations (v7x megacore; harmless on v5e/v6e).
    bt = min(bt, max(1, -(-nt // min_steps)))
    if nt <= 8:
        return nt                                # tiny axis: one full block
    bt = max(8, (bt // 8) * 8)                   # sublane-legal block
    return min(bt, _round_up(nt, 8))


def compute_g_spa_pallas(x_nchw, w1, w2, *, compute_dtype=jnp.float32,
                         out_dtype=jnp.float32, block_bt=None,
                         byte_budget=8 << 20):
    """x_nchw: (N, C, V, T); w1, w2: (D, C) 1x1-conv weights (bias=False).

    Returns g: (N, T, V, V) == softmax(g1(x).permute(0,3,2,1)
                                       @ g2(x).permute(0,3,1,2), axis=-1).
    """
    N, C, V, T = x_nchw.shape
    D = w1.shape[0]
    assert w1.shape == (D, C) and w2.shape == (D, C)
    NT = N * T

    # Fuse the two 1x1 convs once:  (x W1^T)(x W2^T)^T == x (W1^T W2) x^T.
    m = jnp.dot(w1.T, w2, preferred_element_type=jnp.float32).astype(compute_dtype)

    # Channels-last relayout of x. Cast first so this pass moves compute-dtype
    # bytes (halves its HBM traffic in bf16 mode).
    # TODO(synk): hoist this permute into x's producer in a full model.
    x_btvc = jnp.transpose(x_nchw.astype(compute_dtype),
                           (0, 3, 2, 1)).reshape(NT, V, C)

    in_isz = jnp.dtype(compute_dtype).itemsize
    out_isz = jnp.dtype(out_dtype).itemsize
    if block_bt is None:
        block_bt = _pick_block_bt(NT, V, C, in_isz, out_isz,
                                  byte_budget=byte_budget)

    # No divisibility requirement on N*T: pad the (batch, frame) axis up to a
    # block multiple (zero rows -> harmless uniform softmax) and slice it off.
    nt_pad = _round_up(NT, block_bt)
    if nt_pad != NT:
        x_btvc = jnp.pad(x_btvc, ((0, nt_pad - NT), (0, 0), (0, 0)))
    grid = (nt_pad // block_bt,)

    # Advisory cost: tiny flops, memory-bound.
    cost = pl.CostEstimate(
        flops=2 * NT * V * C * (C + V),
        transcendentals=NT * V * V,
        bytes_accessed=(NT * V * C * in_isz + C * C * in_isz
                        + NT * V * V * out_isz))

    # Explicit VMEM budget: count *padded* tiles (lane padding inflates the
    # real footprint), cap below v7x's 64 MiB/TC, raise above the 16/32 MiB
    # scoped defaults on v5e/v6e when the slab needs it.
    c_pad = _round_up(C, 128)
    vv_pad = _round_up(V * V, 128)
    vmem_est = (2 * block_bt * V * c_pad * in_isz        # x tile x2 buffers
                + 2 * block_bt * vv_pad * out_isz        # out tile x2 buffers
                + 2 * _round_up(C, 8) * c_pad * in_isz   # resident M x2
                + block_bt * V * c_pad * 4               # xm (f32)
                + 2 * block_bt * vv_pad * 4)             # s + p (f32)
    vmem_limit = int(min(48 << 20, max(16 << 20, 2 * vmem_est)))

    out = pl.pallas_call(
        _g_spa_kernel,
        out_shape=jax.ShapeDtypeStruct((nt_pad, V * V), out_dtype),
        grid_spec=pltpu.PrefetchScalarGridSpec(
            num_scalar_prefetch=0,
            grid=grid,
            in_specs=[
                pl.BlockSpec((block_bt, V, C), lambda i: (i, 0, 0)),
                pl.BlockSpec((C, C), lambda i: (0, 0)),   # weight stays resident
            ],
            out_specs=pl.BlockSpec((block_bt, V * V), lambda i: (i, 0)),
        ),
        compiler_params=pltpu.CompilerParams(
            # Slabs are independent -> megacore-shardable on v7x (2 TCs);
            # a no-op on v5e/v6e (1 TC).
            dimension_semantics=("parallel",),
            vmem_limit_bytes=vmem_limit,
        ),
        cost_estimate=cost,
    )(x_btvc, m)

    if nt_pad != NT:
        out = out[:NT]
    return out.reshape(N, T, V, V)


def compute_g_spa_ref(x_nchw, w1, w2):
    """Plain-JAX reference matching the PyTorch forward exactly (f32, unfused)."""
    g1 = jnp.einsum("ncvt,dc->ndvt", x_nchw, w1)
    g2 = jnp.einsum("ncvt,dc->ndvt", x_nchw, w2)
    g1p = jnp.transpose(g1, (0, 3, 2, 1))  # (N, T, V, D)
    g2p = jnp.transpose(g2, (0, 3, 1, 2))  # (N, T, D, V)
    g3 = jnp.matmul(g1p, g2p)              # (N, T, V, V)
    return jax.nn.softmax(g3, axis=-1)


if __name__ == "__main__":
    # Small shapes consistent with the module: dim1 = dim2 = 32 (hidden),
    # batch N = 2, joints V = 16, frames T = 8.
    N, C, V, T = 2, 32, 16, 8
    D = 32  # dim2

    key = jax.random.PRNGKey(0)
    kx, k1, k2 = jax.random.split(key, 3)
    x = jax.random.normal(kx, (N, C, V, T), dtype=jnp.float32)
    # Deterministic Conv2d(1x1, bias=False) weights, shape (out, in) = (D, C).
    bound = 1.0 / (C ** 0.5)
    w1 = jax.random.uniform(k1, (D, C), jnp.float32, -bound, bound)
    w2 = jax.random.uniform(k2, (D, C), jnp.float32, -bound, bound)

    g_ref = compute_g_spa_ref(x, w1, w2)

    # f32 MXU path: tight check (only differences are the W1^T@W2 f32
    # reassociation and the approx EUP reciprocal in the softmax epilogue).
    g = jax.block_until_ready(compute_g_spa_pallas(x, w1, w2))
    assert g.shape == (N, T, V, V)
    assert jnp.allclose(g, g_ref, atol=2e-3, rtol=2e-3)
    assert jnp.allclose(jnp.sum(g, axis=-1), 1.0, atol=5e-3)

    # bf16 operands + bf16 writeback (production configuration): f32
    # accumulation and f32 softmax inside the kernel, looser tolerance.
    g_bf16 = jax.block_until_ready(
        compute_g_spa_pallas(x, w1, w2, compute_dtype=jnp.bfloat16,
                             out_dtype=jnp.bfloat16))
    assert g_bf16.shape == (N, T, V, V)
    assert jnp.allclose(g_bf16.astype(jnp.float32), g_ref, atol=1e-1, rtol=1e-1)
    assert jnp.allclose(jnp.sum(g_bf16.astype(jnp.float32), axis=-1), 1.0,
                        atol=2e-2)

    # Non-divisible frame count: exercises the padded-tail path (N*T = 10,
    # block = 8 -> padded to 16, grid of 2).
    T2 = 5
    x2 = jax.random.normal(jax.random.PRNGKey(1), (N, C, V, T2), jnp.float32)
    g2_ref = compute_g_spa_ref(x2, w1, w2)
    g2 = jax.block_until_ready(compute_g_spa_pallas(x2, w1, w2))
    assert g2.shape == (N, T2, V, V)
    assert jnp.allclose(g2, g2_ref, atol=2e-3, rtol=2e-3)

    print("KERNEL_OK")
</pallas_src>

<mosaic_0001>
module attributes {stable_mosaic.version = 11 : i64} {
  func.func @_g_spa_kernel(%arg0: i32, %arg1: memref<8x16x32xf32, #tpu.memory_space<vmem>>, %arg2: memref<32x32xf32, #tpu.memory_space<vmem>>, %arg3: memref<8x256xf32, #tpu.memory_space<vmem>>) attributes {dimension_semantics = [#tpu.dimension_semantics<parallel>], iteration_bounds = array<i64: 2>, scalar_prefetch = 0 : i64, scratch_operands = 0 : i64, tpu.core_type = #tpu.core_type<tc>, window_params = [{transform_indices = @transform_0, window_bounds = array<i64: 8, 16, 32>}, {pipeline_mode = #tpu.pipeline_mode<synchronous>, transform_indices = @transform_1, window_bounds = array<i64: 32, 32>}, {transform_indices = @transform_2, window_bounds = array<i64: 8, 256>}]} {
    %c0 = arith.constant 0 : index
    %c0_0 = arith.constant 0 : index
    %c0_1 = arith.constant 0 : index
    %0 = vector.load %arg1[%c0, %c0_0, %c0_1] : memref<8x16x32xf32, #tpu.memory_space<vmem>>, vector<8x16x32xf32>
    %1 = vector.shape_cast %0 : vector<8x16x32xf32> to vector<128x32xf32>
    %c0_2 = arith.constant 0 : index
    %c0_3 = arith.constant 0 : index
    %2 = vector.load %arg2[%c0_2, %c0_3] : memref<32x32xf32, #tpu.memory_space<vmem>>, vector<32x32xf32>
    %cst = arith.constant dense<0.000000e+00> : vector<128x32xf32>
    %3 = tpu.matmul %1, %2, %cst {dimension_numbers = #tpu.dot_dimension_numbers<[1], [0], [0], [1], [0, 0, 1, 1], [], []>} : vector<128x32xf32>, vector<32x32xf32>, vector<128x32xf32> -> vector<128x32xf32>
    %4 = vector.shape_cast %3 : vector<128x32xf32> to vector<8x16x32xf32>
    %cst_4 = arith.constant dense<0.000000e+00> : vector<8x16x16xf32>
    %5 = tpu.matmul %4, %0, %cst_4 {dimension_numbers = #tpu.dot_dimension_numbers<[2], [2], [1], [1], [0, 0, 0, 1, 1, 1], [0], [0]>} : vector<8x16x32xf32>, vector<8x16x32xf32>, vector<8x16x16xf32> -> vector<8x16x16xf32>
    %cst_5 = arith.constant dense<0xFF800000> : vector<8x16xf32>
    %6 = vector.multi_reduction <maximumf>, %5, %cst_5 [2] : vector<8x16x16xf32> to vector<8x16xf32>
    %7 = vector.shape_cast %6 : vector<8x16xf32> to vector<8x16x1xf32>
    %8 = vector.broadcast %7 : vector<8x16x1xf32> to vector<8x16x16xf32>
    %9 = arith.subf %5, %8 : vector<8x16x16xf32>
    %10 = math.exp %9 : vector<8x16x16xf32>
    %cst_6 = arith.constant dense<0.000000e+00> : vector<8x16xf32>
    %11 = vector.multi_reduction <add>, %10, %cst_6 [2] : vector<8x16x16xf32> to vector<8x16xf32>
    %12 = vector.shape_cast %11 : vector<8x16xf32> to vector<8x16x1xf32>
    %13 = tpu.reciprocal %12 {approx = true} : vector<8x16x1xf32> -> vector<8x16x1xf32>
    %14 = vector.broadcast %13 : vector<8x16x1xf32> to vector<8x16x16xf32>
    %15 = arith.mulf %10, %14 : vector<8x16x16xf32>
    %16 = vector.shape_cast %15 : vector<8x16x16xf32> to vector<8x256xf32>
    %c0_7 = arith.constant 0 : index
    %c0_8 = arith.constant 0 : index
    %17 = vector.load %arg3[%c0_7, %c0_8] : memref<8x256xf32, #tpu.memory_space<vmem>>, vector<8x256xf32>
    tpu.vector_store %arg3[%c0_7, %c0_8], %16 {strides = array<i32>} : memref<8x256xf32, #tpu.memory_space<vmem>>, vector<8x256xf32>,
    return
  }
  func.func @transform_0(%arg0: i32) -> (i32, i32, i32) {
    %c0_i32 = arith.constant 0 : i32
    %c0_i32_0 = arith.constant 0 : i32
    %c0_i32_1 = arith.constant 0 : i32
    return %arg0, %c0_i32, %c0_i32_0 : i32, i32, i32
  }
  func.func @transform_1(%arg0: i32) -> (i32, i32) {
    %c0_i32 = arith.constant 0 : i32
    %c0_i32_0 = arith.constant 0 : i32
    %c0_i32_1 = arith.constant 0 : i32
    return %c0_i32, %c0_i32_0 : i32, i32
  }
  func.func @transform_2(%arg0: i32) -> (i32, i32) {
    %c0_i32 = arith.constant 0 : i32
    %c0_i32_0 = arith.constant 0 : i32
    return %arg0, %c0_i32 : i32, i32
  }
}

</mosaic_0001>

<llo_original>
// kernel: tpu_custom_call.1
$region0: #{tpu_custom_call.1}
  #allocation0 [shape = 'u32[]', space=smem, size = 0x4, offset = 0x4, fixed_abs, tag = 'smem constant byte address 0x4 - core index']
  #allocation1 [shape = 'u32[72,128]{1,0:T(1,128)}', space=vmem, size = 0x9000, scoped, tag = 'internal scratch']
  %s0 = inlined_call_operand.hbm [shape: f32[16,16,32], index: 0, kind: input, shape index: {}]
  %s1 = inlined_call_operand.hbm [shape: f32[32,32], index: 1, kind: input, shape index: {}]
  %s2 = inlined_call_operand.hbm [shape: f32[16,256], index: 2, kind: output, shape index: {}]
  %s3 = sld [smem:[#allocation0]]
  $region49: #{tpu_custom_call.1} parent=0
    _
  %s5 = ssub.s32 1, %s3
  %s6 = scalar_select 0, %s5, %s3
  $region1: #{tpu_custom_call.1} parent=0
    #allocation2 [shape = 'u8[131072]{0}', space=vmem, size = 0x20000, scoped, tag = 'input window, operand 0']
    #allocation3 [shape = 's32[2]{0}', space=sflag, size = 0x8, scoped, tag = 'scoped memory for tpu_custom_call.1']
    #allocation4 [shape = 's32[2]{0}', space=sflag, size = 0x8, scoped, tag = 'scoped memory for tpu_custom_call.1']
    #allocation5 [shape = 'u8[16384]{0}', space=vmem, size = 0x4000, scoped, tag = 'input window, operand 1, single buffered']
    #allocation6 [shape = 's32[1]{0}', space=sflag, size = 0x4, scoped, tag = 'scoped memory for tpu_custom_call.1']
    #allocation7 [shape = 'u8[16384]{0}', space=vmem, size = 0x4000, scoped, tag = 'output window, operand 0']
    %7 = vsyncpa [#allocation3], 0
    %s8 = scalar_lea.sflag [#allocation3], 1
    %9 = vsyncpa %s8, 0
    %10 = vsyncpa [#allocation6], 0
    %11 = vsyncpa [#allocation4], 0
    %s12 = scalar_lea.sflag [#allocation4], 1
    %13 = vsyncpa %s12, 0
    loop: start=0, step=1, limit=4
    $region2: #{tpu_custom_call.1} parent=1 // loop_pre_header
      _
    $region3: #{tpu_custom_call.1} parent=1 // loop_header
      %s15 = sphi 0, %s19
      %p16 = scmp.ge.s32.totalorder %s15, 4
      %s25 = sphi 0, %s27
      %s28 = sphi 0, %s25
      %s29 = sphi 0, %s28
      %s45 = sphi 0, %s29
      %s49 = sphi 0, %s49
      %s51 = sphi 0, %s49
      %s52 = sphi 0, %s51
      %s66 = sphi 0, %s52
      %s72 = sphi 0, %s74
      %s75 = sphi 0, %s72
      %s76 = sphi 0, %s75
      %s92 = sphi 0, %s76
    $region4: #{tpu_custom_call.1} parent=1 // loop_header_branch
      %18 = sbr.rel (%p16) target = $region8
    $region5: #{tpu_custom_call.1} parent=1 // loop_body
      %s20 = ssub.s32 %s15, 1
      %s21 = ssub.s32 %s15, 2
      %s22 = sadd.s32 %s15, 1
      %s23 = ssub.s32 %s15, %s22
      %p24 = scmp.eq.s32.totalorder %s23, 0
      %s26 = sadd.s32 %s25, 1
      %s27 = scalar_select %p24, %s25, %s26
      %p30 = pneg %p24
      %p31 = scmp.eq.s32.totalorder %s15, 1
      %p32 = por %p30, %p31
      %p33 = scmp.ne.s32.totalorder %s25, %s28
      %p34 = scmp.eq.s32.totalorder %s15, 0
      %p35 = por %p33, %p34
      %p36 = scmp.ne.s32.totalorder %s25, %s28
      %p37 = scmp.eq.s32.totalorder %s20, 1
      %p38 = por %p36, %p37
      %p39 = scmp.ne.s32.totalorder %s28, %s29
      %p40 = scmp.eq.s32.totalorder %s20, 0
      %p41 = por %p39, %p40
      %p42 = scmp.ne.s32.totalorder %s28, %s29
      %p43 = scmp.eq.s32.totalorder %s21, 1
      %p44 = por %p42, %p43
      %p46 = scmp.ne.s32.totalorder %s29, %s45
      %p47 = scmp.eq.s32.totalorder %s21, 0
      %p48 = por %p46, %p47
      %s50 = sadd.s32 %s49, 1
      %p53 = scmp.eq.s32.totalorder %s15, 1
      %p54 = scmp.ne.s32.totalorder %s49, %s51
      %p55 = scmp.eq.s32.totalorder %s15, 0
      %p56 = por %p54, %p55
      %p57 = scmp.ne.s32.totalorder %s49, %s51
      %p58 = scmp.eq.s32.totalorder %s20, 1
      %p59 = por %p57, %p58
      %p60 = scmp.ne.s32.totalorder %s51, %s52
      %p61 = scmp.eq.s32.totalorder %s20, 0
      %p62 = por %p60, %p61
      %p63 = scmp.ne.s32.totalorder %s51, %s52
      %p64 = scmp.eq.s32.totalorder %s21, 1
      %p65 = por %p63, %p64
      %p67 = scmp.ne.s32.totalorder %s52, %s66
      %p68 = scmp.eq.s32.totalorder %s21, 0
      %p69 = por %p67, %p68
      %s70 = ssub.s32 %s15, %s22
      %p71 = scmp.eq.s32.totalorder %s70, 0
      %s73 = sadd.s32 %s72, 1
      %s74 = scalar_select %p71, %s72, %s73
      %p77 = pneg %p71
      %p78 = scmp.eq.s32.totalorder %s15, 1
      %p79 = por %p77, %p78
      %p80 = scmp.ne.s32.totalorder %s72, %s75
      %p81 = scmp.eq.s32.totalorder %s15, 0
      %p82 = por %p80, %p81
      %p83 = scmp.ne.s32.totalorder %s72, %s75
      %p84 = scmp.eq.s32.totalorder %s20, 1
      %p85 = por %p83, %p84
      %p86 = scmp.ne.s32.totalorder %s75, %s76
      %p87 = scmp.eq.s32.totalorder %s20, 0
      %p88 = por %p86, %p87
      %p89 = scmp.ne.s32.totalorder %s75, %s76
      %p90 = scmp.eq.s32.totalorder %s21, 1
      %p91 = por %p89, %p90
      %p93 = scmp.ne.s32.totalorder %s76, %s92
      %p94 = scmp.eq.s32.totalorder %s21, 0
      %p95 = por %p93, %p94
      %p96 = scmp.le.s32.totalorder 1, %s15
      %p97 = scmp.lt.s32.totalorder %s15, 3
      %p98 = pnand %p96, %p97
      %p99 = pneg %p98
      // Predicated region
      $region9: #{tpu_custom_call.1} parent=5 // pred_check
        _
      $region10: #{tpu_custom_call.1} parent=5 // pred_check_branch
        %101 = sbr.rel (%p98) target = $region12
      $region11: #{tpu_custom_call.1} parent=5 // pred_region
        %s102 = ssub.s32 %s15, 1
        // Predicated region
        $region13: #{tpu_custom_call.1} parent=11 // pred_check
          %p103 = pneg %p62
        $region14: #{tpu_custom_call.1} parent=11 // pred_check_branch
          %105 = sbr.rel (%p103) target = $region16
        $region15: #{tpu_custom_call.1} parent=11 // pred_region
          %107 = vsyncadd [#allocation6], 0
          %s108 = sshll.u32 %s1, 4
          %s109 = int_to_ptr.hbm [resolvable:$true] %s108
          %s110 = sshll.u32 [#allocation5], 4
          %s111 = int_to_ptr.vmem [resolvable:$true] %s110
          %116 = dma.hbm_to_vmem [thread:$0]  %s109, 512, %s111, [#allocation6], 128, 128, 8
        $region16: #{tpu_custom_call.1} parent=11 // pred_fallthru
          _
      $region12: #{tpu_custom_call.1} parent=5 // pred_fallthru
        _
      %p117 = scmp.lt.s32.totalorder %s15, 2
      // Predicated region
      $region17: #{tpu_custom_call.1} parent=5 // pred_check
        %p118 = pneg %p117
      $region18: #{tpu_custom_call.1} parent=5 // pred_check_branch
        %120 = sbr.rel (%p118) target = $region20
      $region19: #{tpu_custom_call.1} parent=5 // pred_region
        // Predicated region
        $region21: #{tpu_custom_call.1} parent=19 // pred_check
          %p121 = pneg %p35
        $region22: #{tpu_custom_call.1} parent=19 // pred_check_branch
          %123 = sbr.rel (%p121) target = $region24
        $region23: #{tpu_custom_call.1} parent=19 // pred_region
          %s124 = sand.u32 %s25, 1
          %s125 = scalar_lea.sflag [#allocation3], %s124
          %s126 = sand.u32 %s25, 1
          %s127 = smul.addr %s126, 128
          %s128 = scalar_lea.vmem [#allocation2], %s127
          %s129 = smul.u32 8, %s15
          %131 = vsyncadd %s125, 0
          %s132 = smul.addr %s129, 2
          %s133 = smul.addr %s132, 8
          %s134 = scalar_lea.hbm %s0, %s133
          %s135 = sshll.u32 %s134, 4
          %s136 = int_to_ptr.hbm [resolvable:$true] %s135
          %s137 = sshll.u32 %s128, 4
          %s138 = int_to_ptr.vmem [resolvable:$true] %s137
          %143 = dma.hbm_to_vmem [thread:$0]  %s136, 2048, %s138, %s125, 128, 128, 8
        $region24: #{tpu_custom_call.1} parent=19 // pred_fallthru
          _
      $region20: #{tpu_custom_call.1} parent=5 // pred_fallthru
        _
      %p144 = scmp.le.s32.totalorder 1, %s15
      %p145 = scmp.lt.s32.totalorder %s15, 3
      %p146 = pnand %p144, %p145
      %p147 = pneg %p146
      // Predicated region
      $region25: #{tpu_custom_call.1} parent=5 // pred_check
        _
      $region26: #{tpu_custom_call.1} parent=5 // pred_check_branch
        %149 = sbr.rel (%p146) target = $region28
      $region27: #{tpu_custom_call.1} parent=5 // pred_region
        %s150 = ssub.s32 %s15, 1
        %s151 = sand.u32 %s28, 1
        %s152 = scalar_lea.sflag [#allocation3], %s151
        %s153 = sand.u32 %s28, 1
        %s154 = smul.addr %s153, 128
        %s155 = scalar_lea.vmem [#allocation2], %s154
        // Predicated region
        $region29: #{tpu_custom_call.1} parent=27 // pred_check
          %p156 = pneg %p41
        $region30: #{tpu_custom_call.1} parent=27 // pred_check_branch
          %158 = sbr.rel (%p156) target = $region32
        $region31: #{tpu_custom_call.1} parent=27 // pred_region
          %160 = dma.done %s152, 2048
        $region32: #{tpu_custom_call.1} parent=27 // pred_fallthru
          _
        // Predicated region
        $region33: #{tpu_custom_call.1} parent=27 // pred_check
          %p161 = pneg %p62
        $region34: #{tpu_custom_call.1} parent=27 // pred_check_branch
          %163 = sbr.rel (%p161) target = $region36
        $region35: #{tpu_custom_call.1} parent=27 // pred_region
          %165 = dma.done [#allocation6], 512
        $region36: #{tpu_custom_call.1} parent=27 // pred_fallthru
          _
        %s166 = sand.u32 %s28, 1
        %s167 = scalar_lea.sflag [#allocation3], %s166
        %s168 = sand.u32 %s28, 1
        %s169 = smul.addr %s168, 128
        %s170 = scalar_lea.vmem [#allocation2], %s169
        %p171 = pneg %p41
        %p172 = pneg %p38
        %p173 = pneg %p62
        %p174 = pneg %p59
        %p175 = pneg %p88
        %p176 = pneg %p85
        %s177 = sand.u32 %s75, 1
        %s178 = scalar_lea.sflag [#allocation4], %s177
        %s179 = sand.u32 %s75, 1
        %s180 = smul.addr %s179, 16
        %s181 = scalar_lea.vmem [#allocation7], %s180
        %s182 = smul.u32 8, %s20
        %v183 = vld [vmem:[%s155] sm:$0xff]
        %v184 = vld [vmem:[%s155 + $0x8] sm:$0xff]
        %v185 = vld [vmem:[%s155 + $0x10] sm:$0xff]
        %v186 = vld [vmem:[%s155 + $0x18] sm:$0xff]
        %v187 = vld [vmem:[%s155 + $0x20] sm:$0xff]
        %v188 = vld [vmem:[%s155 + $0x28] sm:$0xff]
        %v189 = vld [vmem:[%s155 + $0x30] sm:$0xff]
        %v190 = vld [vmem:[%s155 + $0x38] sm:$0xff]
        %v191 = vld [vmem:[%s155 + $0x40] sm:$0xff]
        %v192 = vld [vmem:[%s155 + $0x48] sm:$0xff]
        %v193 = vld [vmem:[%s155 + $0x50] sm:$0xff]
        %v194 = vld [vmem:[%s155 + $0x58] sm:$0xff]
        %v195 = vld [vmem:[%s155 + $0x60] sm:$0xff]
        %v196 = vld [vmem:[%s155 + $0x68] sm:$0xff]
        %v197 = vld [vmem:[%s155 + $0x70] sm:$0xff]
        %v198 = vld [vmem:[%s155 + $0x78] sm:$0xff]
        %v199 = vld [vmem:[#allocation5] sm:$0xff]
        %v200 = vld [vmem:[#allocation5 + $0x8] sm:$0xff]
        %v201 = vld [vmem:[#allocation5 + $0x10] sm:$0xff]
        %v202 = vld [vmem:[#allocation5 + $0x18] sm:$0xff]
        %vm203 = vcmask 261120
        %v205 = vsel %vm203, %v183, 0
        %v208 = vsel %vm203, %v184, 0
        %v211 = vsel %vm203, %v185, 0
        %v214 = vsel %vm203, %v186, 0
        %v217 = vsel %vm203, %v187, 0
        %v220 = vsel %vm203, %v188, 0
        %v223 = vsel %vm203, %v189, 0
        %v226 = vsel %vm203, %v190, 0
        %v229 = vsel %vm203, %v191, 0
        %v232 = vsel %vm203, %v192, 0
        %v235 = vsel %vm203, %v193, 0
        %v238 = vsel %vm203, %v194, 0
        %v241 = vsel %vm203, %v195, 0
        %v244 = vsel %vm203, %v196, 0
        %v247 = vsel %vm203, %v197, 0
        %v250 = vsel %vm203, %v198, 0
        %252 = vmatpush.msra.mxu0 0.0
        %253 = vmatpush.msra.mxu0 0.0
        %254 = vmatpush.msra.mxu0 0.0
        %255 = vmatpush.msra.mxu0 0.0
        %256 = vmatpush.msra.mxu0 0.0
        %257 = vmatpush.msra.mxu0 0.0
        %258 = vmatpush.msra.mxu0 0.0
        %259 = vmatpush.msra.mxu0 0.0
        %260 = vmatpush.msra.mxu0 0.0
        %261 = vmatpush.msra.mxu0 0.0
        %262 = vmatpush.msra.mxu0 0.0
        %263 = vmatpush.msra.mxu0 0.0
        %264 = vmatpush.msra.mxu0 %v202
        %265 = vmatpush.msra.mxu0 %v201
        %266 = vmatpush.msra.mxu0 %v200
        %267 = vmatpush.msra.mxu0 %v199
        %268 = vmatmul.f32.gmra.mxu0 %v205
        %v269 = vpop.f32.mrf.mxu0
        %v270 = vadd.f32 0.0, %v269
        %271 = vmatmul.f32.gmra.mxu0 %v208
        %v272 = vpop.f32.mrf.mxu0
        %v273 = vadd.f32 0.0, %v272
        %274 = vmatmul.f32.gmra.mxu0 %v211
        %v275 = vpop.f32.mrf.mxu0
        %v276 = vadd.f32 0.0, %v275
        %277 = vmatmul.f32.gmra.mxu0 %v214
        %v278 = vpop.f32.mrf.mxu0
        %v279 = vadd.f32 0.0, %v278
        %280 = vmatmul.f32.gmra.mxu0 %v217
        %v281 = vpop.f32.mrf.mxu0
        %v282 = vadd.f32 0.0, %v281
        %283 = vmatmul.f32.gmra.mxu0 %v220
        %v284 = vpop.f32.mrf.mxu0
        %v285 = vadd.f32 0.0, %v284
        %286 = vmatmul.f32.gmra.mxu0 %v223
        %v287 = vpop.f32.mrf.mxu0
        %v288 = vadd.f32 0.0, %v287
        %289 = vmatmul.f32.gmra.mxu0 %v226
        %v290 = vpop.f32.mrf.mxu0
        %v291 = vadd.f32 0.0, %v290
        %292 = vmatmul.f32.gmra.mxu0 %v229
        %v293 = vpop.f32.mrf.mxu0
        %v294 = vadd.f32 0.0, %v293
        %295 = vmatmul.f32.gmra.mxu0 %v232
        %v296 = vpop.f32.mrf.mxu0
        %v297 = vadd.f32 0.0, %v296
        %298 = vmatmul.f32.gmra.mxu0 %v235
        %v299 = vpop.f32.mrf.mxu0
        %v300 = vadd.f32 0.0, %v299
        %301 = vmatmul.f32.gmra.mxu0 %v238
        %v302 = vpop.f32.mrf.mxu0
        %v303 = vadd.f32 0.0, %v302
        %304 = vmatmul.f32.gmra.mxu0 %v241
        %v305 = vpop.f32.mrf.mxu0
        %v306 = vadd.f32 0.0, %v305
        %307 = vmatmul.f32.gmra.mxu0 %v244
        %v308 = vpop.f32.mrf.mxu0
        %v309 = vadd.f32 0.0, %v308
        %310 = vmatmul.f32.gmra.mxu0 %v247
        %v311 = vpop.f32.mrf.mxu0
        %v312 = vadd.f32 0.0, %v311
        %313 = vmatmul.f32.gmra.mxu0 %v250
        %v314 = vpop.f32.mrf.mxu0
        %v315 = vadd.f32 0.0, %v314
        %316 = vdwg.mxu0
        %v318 = vsel %vm203, %v270, 0
        %v321 = vsel %vm203, %v273, 0
        %323 = vmatpush.xpose.msra.mxu0 0.0
        %324 = vmatpush.xpose.msra.mxu0 0.0
        %325 = vmatpush.xpose.msra.mxu0 0.0
        %326 = vmatpush.xpose.msra.mxu0 0.0
        %327 = vmatpush.xpose.msra.mxu0 0.0
        %328 = vmatpush.xpose.msra.mxu0 0.0
        %329 = vmatpush.xpose.msra.mxu0 0.0
        %330 = vmatpush.xpose.msra.mxu0 0.0
        %331 = vmatpush.xpose.msra.mxu0 0.0
        %332 = vmatpush.xpose.msra.mxu0 0.0
        %333 = vmatpush.xpose.msra.mxu0 0.0
        %334 = vmatpush.xpose.msra.mxu0 0.0
        %335 = vmatpush.xpose.msra.mxu0 0.0
        %336 = vmatpush.xpose.msra.mxu0 0.0
        %337 = vmatpush.xpose.msra.mxu0 %v208
        %338 = vmatpush.xpose.msra.mxu0 %v205
        %339 = vmatmul.f32.gmra.mxu0 %v318
        %v340 = vpop.f32.mrf.mxu0
        %v341 = vadd.f32 0.0, %v340
        %342 = vmatmul.f32.gmra.mxu0 %v321
        %v343 = vpop.f32.mrf.mxu0
        %v344 = vadd.f32 0.0, %v343
        %345 = vdwg.mxu0
        %v347 = vsel %vm203, %v276, 0
        %v350 = vsel %vm203, %v279, 0
        %352 = vmatpush.xpose.msra.mxu0 0.0
        %353 = vmatpush.xpose.msra.mxu0 0.0
        %354 = vmatpush.xpose.msra.mxu0 0.0
        %355 = vmatpush.xpose.msra.mxu0 0.0
        %356 = vmatpush.xpose.msra.mxu0 0.0
        %357 = vmatpush.xpose.msra.mxu0 0.0
        %358 = vmatpush.xpose.msra.mxu0 0.0
        %359 = vmatpush.xpose.msra.mxu0 0.0
        %360 = vmatpush.xpose.msra.mxu0 0.0
        %361 = vmatpush.xpose.msra.mxu0 0.0
        %362 = vmatpush.xpose.msra.mxu0 0.0
        %363 = vmatpush.xpose.msra.mxu0 0.0
        %364 = vmatpush.xpose.msra.mxu0 0.0
        %365 = vmatpush.xpose.msra.mxu0 0.0
        %366 = vmatpush.xpose.msra.mxu0 %v214
        %367 = vmatpush.xpose.msra.mxu0 %v211
        %368 = vmatmul.f32.gmra.mxu0 %v347
        %v369 = vpop.f32.mrf.mxu0
        %v370 = vadd.f32 0.0, %v369
        %371 = vmatmul.f32.gmra.mxu0 %v350
        %v372 = vpop.f32.mrf.mxu0
        %v373 = vadd.f32 0.0, %v372
        %374 = vdwg.mxu0
        %v376 = vsel %vm203, %v282, 0
        %v379 = vsel %vm203, %v285, 0
        %381 = vmatpush.xpose.msra.mxu0 0.0
        %382 = vmatpush.xpose.msra.mxu0 0.0
        %383 = vmatpush.xpose.msra.mxu0 0.0
        %384 = vmatpush.xpose.msra.mxu0 0.0
        %385 = vmatpush.xpose.msra.mxu0 0.0
        %386 = vmatpush.xpose.msra.mxu0 0.0
        %387 = vmatpush.xpose.msra.mxu0 0.0
        %388 = vmatpush.xpose.msra.mxu0 0.0
        %389 = vmatpush.xpose.msra.mxu0 0.0
        %390 = vmatpush.xpose.msra.mxu0 0.0
        %391 = vmatpush.xpose.msra.mxu0 0.0
        %392 = vmatpush.xpose.msra.mxu0 0.0
        %393 = vmatpush.xpose.msra.mxu0 0.0
        %394 = vmatpush.xpose.msra.mxu0 0.0
        %395 = vmatpush.xpose.msra.mxu0 %v220
        %396 = vmatpush.xpose.msra.mxu0 %v217
        %397 = vmatmul.f32.gmra.mxu0 %v376
        %v398 = vpop.f32.mrf.mxu0
        %v399 = vadd.f32 0.0, %v398
        %400 = vmatmul.f32.gmra.mxu0 %v379
        %v401 = vpop.f32.mrf.mxu0
        %v402 = vadd.f32 0.0, %v401
        %403 = vdwg.mxu0
        %v405 = vsel %vm203, %v288, 0
        %v408 = vsel %vm203, %v291, 0
        %410 = vmatpush.xpose.msra.mxu0 0.0
        %411 = vmatpush.xpose.msra.mxu0 0.0
        %412 = vmatpush.xpose.msra.mxu0 0.0
        %413 = vmatpush.xpose.msra.mxu0 0.0
        %414 = vmatpush.xpose.msra.mxu0 0.0
        %415 = vmatpush.xpose.msra.mxu0 0.0
        %416 = vmatpush.xpose.msra.mxu0 0.0
        %417 = vmatpush.xpose.msra.mxu0 0.0
        %418 = vmatpush.xpose.msra.mxu0 0.0
        %419 = vmatpush.xpose.msra.mxu0 0.0
        %420 = vmatpush.xpose.msra.mxu0 0.0
        %421 = vmatpush.xpose.msra.mxu0 0.0
        %422 = vmatpush.xpose.msra.mxu0 0.0
        %423 = vmatpush.xpose.msra.mxu0 0.0
        %424 = vmatpush.xpose.msra.mxu0 %v226
        %425 = vmatpush.xpose.msra.mxu0 %v223
        %426 = vmatmul.f32.gmra.mxu0 %v405
        %v427 = vpop.f32.mrf.mxu0
        %v428 = vadd.f32 0.0, %v427
        %429 = vmatmul.f32.gmra.mxu0 %v408
        %v430 = vpop.f32.mrf.mxu0
        %v431 = vadd.f32 0.0, %v430
        %432 = vdwg.mxu0
        %v434 = vsel %vm203, %v294, 0
        %v437 = vsel %vm203, %v297, 0
        %439 = vmatpush.xpose.msra.mxu0 0.0
        %440 = vmatpush.xpose.msra.mxu0 0.0
        %441 = vmatpush.xpose.msra.mxu0 0.0
        %442 = vmatpush.xpose.msra.mxu0 0.0
        %443 = vmatpush.xpose.msra.mxu0 0.0
        %444 = vmatpush.xpose.msra.mxu0 0.0
        %445 = vmatpush.xpose.msra.mxu0 0.0
        %446 = vmatpush.xpose.msra.mxu0 0.0
        %447 = vmatpush.xpose.msra.mxu0 0.0
        %448 = vmatpush.xpose.msra.mxu0 0.0
        %449 = vmatpush.xpose.msra.mxu0 0.0
        %450 = vmatpush.xpose.msra.mxu0 0.0
        %451 = vmatpush.xpose.msra.mxu0 0.0
        %452 = vmatpush.xpose.msra.mxu0 0.0
        %453 = vmatpush.xpose.msra.mxu0 %v232
        %454 = vmatpush.xpose.msra.mxu0 %v229
        %455 = vmatmul.f32.gmra.mxu0 %v434
        %v456 = vpop.f32.mrf.mxu0
        %v457 = vadd.f32 0.0, %v456
        %458 = vmatmul.f32.gmra.mxu0 %v437
        %v459 = vpop.f32.mrf.mxu0
        %v460 = vadd.f32 0.0, %v459
        %461 = vdwg.mxu0
        %v463 = vsel %vm203, %v300, 0
        %v466 = vsel %vm203, %v303, 0
        %468 = vmatpush.xpose.msra.mxu0 0.0
        %469 = vmatpush.xpose.msra.mxu0 0.0
        %470 = vmatpush.xpose.msra.mxu0 0.0
        %471 = vmatpush.xpose.msra.mxu0 0.0
        %472 = vmatpush.xpose.msra.mxu0 0.0
        %473 = vmatpush.xpose.msra.mxu0 0.0
        %474 = vmatpush.xpose.msra.mxu0 0.0
        %475 = vmatpush.xpose.msra.mxu0 0.0
        %476 = vmatpush.xpose.msra.mxu0 0.0
        %477 = vmatpush.xpose.msra.mxu0 0.0
        %478 = vmatpush.xpose.msra.mxu0 0.0
        %479 = vmatpush.xpose.msra.mxu0 0.0
        %480 = vmatpush.xpose.msra.mxu0 0.0
        %481 = vmatpush.xpose.msra.mxu0 0.0
        %482 = vmatpush.xpose.msra.mxu0 %v238
        %483 = vmatpush.xpose.msra.mxu0 %v235
        %484 = vmatmul.f32.gmra.mxu0 %v463
        %v485 = vpop.f32.mrf.mxu0
        %v486 = vadd.f32 0.0, %v485
        %487 = vmatmul.f32.gmra.mxu0 %v466
        %v488 = vpop.f32.mrf.mxu0
        %v489 = vadd.f32 0.0, %v488
        %490 = vdwg.mxu0
        %v492 = vsel %vm203, %v306, 0
        %v495 = vsel %vm203, %v309, 0
        %497 = vmatpush.xpose.msra.mxu0 0.0
        %498 = vmatpush.xpose.msra.mxu0 0.0
        %499 = vmatpush.xpose.msra.mxu0 0.0
        %500 = vmatpush.xpose.msra.mxu0 0.0
        %501 = vmatpush.xpose.msra.mxu0 0.0
        %502 = vmatpush.xpose.msra.mxu0 0.0
        %503 = vmatpush.xpose.msra.mxu0 0.0
        %504 = vmatpush.xpose.msra.mxu0 0.0
        %505 = vmatpush.xpose.msra.mxu0 0.0
        %506 = vmatpush.xpose.msra.mxu0 0.0
        %507 = vmatpush.xpose.msra.mxu0 0.0
        %508 = vmatpush.xpose.msra.mxu0 0.0
        %509 = vmatpush.xpose.msra.mxu0 0.0
        %510 = vmatpush.xpose.msra.mxu0 0.0
        %511 = vmatpush.xpose.msra.mxu0 %v244
        %512 = vmatpush.xpose.msra.mxu0 %v241
        %513 = vmatmul.f32.gmra.mxu0 %v492
        %v514 = vpop.f32.mrf.mxu0
        %v515 = vadd.f32 0.0, %v514
        %516 = vmatmul.f32.gmra.mxu0 %v495
        %v517 = vpop.f32.mrf.mxu0
        %v518 = vadd.f32 0.0, %v517
        %519 = vdwg.mxu0
        %v521 = vsel %vm203, %v312, 0
        %v524 = vsel %vm203, %v315, 0
        %526 = vmatpush.xpose.msra.mxu0 0.0
        %527 = vmatpush.xpose.msra.mxu0 0.0
        %528 = vmatpush.xpose.msra.mxu0 0.0
        %529 = vmatpush.xpose.msra.mxu0 0.0
        %530 = vmatpush.xpose.msra.mxu0 0.0
        %531 = vmatpush.xpose.msra.mxu0 0.0
        %532 = vmatpush.xpose.msra.mxu0 0.0
        %533 = vmatpush.xpose.msra.mxu0 0.0
        %534 = vmatpush.xpose.msra.mxu0 0.0
        %535 = vmatpush.xpose.msra.mxu0 0.0
        %536 = vmatpush.xpose.msra.mxu0 0.0
        %537 = vmatpush.xpose.msra.mxu0 0.0
        %538 = vmatpush.xpose.msra.mxu0 0.0
        %539 = vmatpush.xpose.msra.mxu0 0.0
        %540 = vmatpush.xpose.msra.mxu0 %v250
        %541 = vmatpush.xpose.msra.mxu0 %v247
        %542 = vmatmul.f32.gmra.mxu0 %v521
        %v543 = vpop.f32.mrf.mxu0
        %v544 = vadd.f32 0.0, %v543
        %545 = vmatmul.f32.gmra.mxu0 %v524
        %v546 = vpop.f32.mrf.mxu0
        %v547 = vadd.f32 0.0, %v546
        %548 = vdwg.mxu0
        %vm549 = vcmask 130048
        %v550 = vsel %vm549, %v341, -inf
        %551 = vmax.xlane.f32.xlu0 %v550
        %v552 = vpop.xlane.xlu0 %551
        %v553 = vsel %vm549, %v344, -inf
        %554 = vmax.xlane.f32.xlu0 %v553
        %v555 = vpop.xlane.xlu0 %554
        %v556 = vsel %vm549, %v370, -inf
        %557 = vmax.xlane.f32.xlu0 %v556
        %v558 = vpop.xlane.xlu0 %557
        %v559 = vsel %vm549, %v373, -inf
        %560 = vmax.xlane.f32.xlu0 %v559
        %v561 = vpop.xlane.xlu0 %560
        %v562 = vsel %vm549, %v399, -inf
        %563 = vmax.xlane.f32.xlu0 %v562
        %v564 = vpop.xlane.xlu0 %563
        %v565 = vsel %vm549, %v402, -inf
        %566 = vmax.xlane.f32.xlu0 %v565
        %v567 = vpop.xlane.xlu0 %566
        %v568 = vsel %vm549, %v428, -inf
        %569 = vmax.xlane.f32.xlu0 %v568
        %v570 = vpop.xlane.xlu0 %569
        %v571 = vsel %vm549, %v431, -inf
        %572 = vmax.xlane.f32.xlu0 %v571
        %v573 = vpop.xlane.xlu0 %572
        %v574 = vsel %vm549, %v457, -inf
        %575 = vmax.xlane.f32.xlu0 %v574
        %v576 = vpop.xlane.xlu0 %575
        %v577 = vsel %vm549, %v460, -inf
        %578 = vmax.xlane.f32.xlu0 %v577
        %v579 = vpop.xlane.xlu0 %578
        %v580 = vsel %vm549, %v486, -inf
        %581 = vmax.xlane.f32.xlu0 %v580
        %v582 = vpop.xlane.xlu0 %581
        %v583 = vsel %vm549, %v489, -inf
        %584 = vmax.xlane.f32.xlu0 %v583
        %v585 = vpop.xlane.xlu0 %584
        %v586 = vsel %vm549, %v515, -inf
        %587 = vmax.xlane.f32.xlu0 %v586
        %v588 = vpop.xlane.xlu0 %587
        %v589 = vsel %vm549, %v518, -inf
        %590 = vmax.xlane.f32.xlu0 %v589
        %v591 = vpop.xlane.xlu0 %590
        %v592 = vsel %vm549, %v544, -inf
        %593 = vmax.xlane.f32.xlu0 %v592
        %v594 = vpop.xlane.xlu0 %593
        %v595 = vsel %vm549, %v547, -inf
        %596 = vmax.xlane.f32.xlu0 %v595
        %v597 = vpop.xlane.xlu0 %596
        %v598 = vsub.f32 %v341, %v552
        %v599 = vsub.f32 %v344, %v555
        %v600 = vsub.f32 %v370, %v558
        %v601 = vsub.f32 %v373, %v561
        %v602 = vsub.f32 %v399, %v564
        %v603 = vsub.f32 %v402, %v567
        %v604 = vsub.f32 %v428, %v570
        %v605 = vsub.f32 %v431, %v573
        %v606 = vsub.f32 %v457, %v576
        %v607 = vsub.f32 %v460, %v579
        %v608 = vsub.f32 %v486, %v582
        %v609 = vsub.f32 %v489, %v585
        %v610 = vsub.f32 %v515, %v588
        %v611 = vsub.f32 %v518, %v591
        %v612 = vsub.f32 %v544, %v594
        %v613 = vsub.f32 %v547, %v597
        %v614 = vmul.f32 %v598, 1.442695
        %v615 = vpow.pop %v614
        %v616 = vmul.f32 %v599, 1.442695
        %v617 = vpow.pop %v616
        %v618 = vmul.f32 %v600, 1.442695
        %v619 = vpow.pop %v618
        %v620 = vmul.f32 %v601, 1.442695
        %v621 = vpow.pop %v620
        %v622 = vmul.f32 %v602, 1.442695
        %v623 = vpow.pop %v622
        %v624 = vmul.f32 %v603, 1.442695
        %v625 = vpow.pop %v624
        %v626 = vmul.f32 %v604, 1.442695
        %v627 = vpow.pop %v626
        %v628 = vmul.f32 %v605, 1.442695
        %v629 = vpow.pop %v628
        %v630 = vmul.f32 %v606, 1.442695
        %v631 = vpow.pop %v630
        %v632 = vmul.f32 %v607, 1.442695
        %v633 = vpow.pop %v632
        %v634 = vmul.f32 %v608, 1.442695
        %v635 = vpow.pop %v634
        %v636 = vmul.f32 %v609, 1.442695
        %v637 = vpow.pop %v636
        %v638 = vmul.f32 %v610, 1.442695
        %v639 = vpow.pop %v638
        %v640 = vmul.f32 %v611, 1.442695
        %v641 = vpow.pop %v640
        %v642 = vmul.f32 %v612, 1.442695
        %v643 = vpow.pop %v642
        %v644 = vmul.f32 %v613, 1.442695
        %v645 = vpow.pop %v644
        %v646 = vsel %vm549, %v615, 0.0
        %647 = vadd.xlane.f32.xlu0 %v646
        %v648 = vpop.xlane.xlu0 %647
        %v649 = vsel %vm549, %v617, 0.0
        %650 = vadd.xlane.f32.xlu0 %v649
        %v651 = vpop.xlane.xlu0 %650
        %v652 = vsel %vm549, %v619, 0.0
        %653 = vadd.xlane.f32.xlu0 %v652
        %v654 = vpop.xlane.xlu0 %653
        %v655 = vsel %vm549, %v621, 0.0
        %656 = vadd.xlane.f32.xlu0 %v655
        %v657 = vpop.xlane.xlu0 %656
        %v658 = vsel %vm549, %v623, 0.0
        %659 = vadd.xlane.f32.xlu0 %v658
        %v660 = vpop.xlane.xlu0 %659
        %v661 = vsel %vm549, %v625, 0.0
        %662 = vadd.xlane.f32.xlu0 %v661
        %v663 = vpop.xlane.xlu0 %662
        %v664 = vsel %vm549, %v627, 0.0
        %665 = vadd.xlane.f32.xlu0 %v664
        %v666 = vpop.xlane.xlu0 %665
        %v667 = vsel %vm549, %v629, 0.0
        %668 = vadd.xlane.f32.xlu0 %v667
        %v669 = vpop.xlane.xlu0 %668
        %v670 = vsel %vm549, %v631, 0.0
        %671 = vadd.xlane.f32.xlu0 %v670
        %v672 = vpop.xlane.xlu0 %671
        %v673 = vsel %vm549, %v633, 0.0
        %674 = vadd.xlane.f32.xlu0 %v673
        %v675 = vpop.xlane.xlu0 %674
        %v676 = vsel %vm549, %v635, 0.0
        %677 = vadd.xlane.f32.xlu0 %v676
        %v678 = vpop.xlane.xlu0 %677
        %v679 = vsel %vm549, %v637, 0.0
        %680 = vadd.xlane.f32.xlu0 %v679
        %v681 = vpop.xlane.xlu0 %680
        %v682 = vsel %vm549, %v639, 0.0
        %683 = vadd.xlane.f32.xlu0 %v682
        %v684 = vpop.xlane.xlu0 %683
        %v685 = vsel %vm549, %v641, 0.0
        %686 = vadd.xlane.f32.xlu0 %v685
        %v687 = vpop.xlane.xlu0 %686
        %v688 = vsel %vm549, %v643, 0.0
        %689 = vadd.xlane.f32.xlu0 %v688
        %v690 = vpop.xlane.xlu0 %689
        %v691 = vsel %vm549, %v645, 0.0
        %692 = vadd.xlane.f32.xlu0 %v691
        %v693 = vpop.xlane.xlu0 %692
        %v694 = vrcp.pop %v648
        %v695 = vrcp.pop %v651
        %v696 = vrcp.pop %v654
        %v697 = vrcp.pop %v657
        %v698 = vrcp.pop %v660
        %v699 = vrcp.pop %v663
        %v700 = vrcp.pop %v666
        %v701 = vrcp.pop %v669
        %v702 = vrcp.pop %v672
        %v703 = vrcp.pop %v675
        %v704 = vrcp.pop %v678
        %v705 = vrcp.pop %v681
        %v706 = vrcp.pop %v684
        %v707 = vrcp.pop %v687
        %v708 = vrcp.pop %v690
        %v709 = vrcp.pop %v693
        %v710 = vmul.f32 %v615, %v694
        %v711 = vmul.f32 %v617, %v695
        %v712 = vmul.f32 %v619, %v696
        %v713 = vmul.f32 %v621, %v697
        %v714 = vmul.f32 %v623, %v698
        %v715 = vmul.f32 %v625, %v699
        %v716 = vmul.f32 %v627, %v700
        %v717 = vmul.f32 %v629, %v701
        %v718 = vmul.f32 %v631, %v702
        %v719 = vmul.f32 %v633, %v703
        %v720 = vmul.f32 %v635, %v704
        %v721 = vmul.f32 %v637, %v705
        %v722 = vmul.f32 %v639, %v706
        %v723 = vmul.f32 %v641, %v707
        %v724 = vmul.f32 %v643, %v708
        %v725 = vmul.f32 %v645, %v709
        %v726 = vrot.slane %v714, 4
        %vm727 = vcmask 1047556
        %v728 = vsel %vm727, %v726, %v710
        %v729 = vrot.slane %v710, 4
        %v730 = vsel %vm727, %v714, %v729
        %v732 = vunpack.c.l.s4 1983009808
        %v733 = vunpack.c.0.s8 %v732
        %v734 = vperm.slane %v728, %v733
        %v736 = vunpack.c.l.s4 1983009808
        %v737 = vunpack.c.0.s8 %v736
        %v738 = vperm.slane %v730, %v737
        %v739 = vrot.slane %v716, 4
        %v740 = vsel %vm727, %v739, %v712
        %v741 = vrot.slane %v712, 4
        %v742 = vsel %vm727, %v716, %v741
        %v744 = vunpack.c.l.s4 1983009808
        %v745 = vunpack.c.0.s8 %v744
        %v746 = vperm.slane %v740, %v745
        %v748 = vunpack.c.l.s4 1983009808
        %v749 = vunpack.c.0.s8 %v748
        %v750 = vperm.slane %v742, %v749
        %v751 = vrot.slane %v722, 4
        %v752 = vsel %vm727, %v751, %v718
        %v753 = vrot.slane %v718, 4
        %v754 = vsel %vm727, %v722, %v753
        %v756 = vunpack.c.l.s4 1983009808
        %v757 = vunpack.c.0.s8 %v756
        %v758 = vperm.slane %v752, %v757
        %v760 = vunpack.c.l.s4 1983009808
        %v761 = vunpack.c.0.s8 %v760
        %v762 = vperm.slane %v754, %v761
        %v763 = vrot.slane %v724, 4
        %v764 = vsel %vm727, %v763, %v720
        %v765 = vrot.slane %v720, 4
        %v766 = vsel %vm727, %v724, %v765
        %v768 = vunpack.c.l.s4 1983009808
        %v769 = vunpack.c.0.s8 %v768
        %v770 = vperm.slane %v764, %v769
        %v772 = vunpack.c.l.s4 1983009808
        %v773 = vunpack.c.0.s8 %v772
        %v774 = vperm.slane %v766, %v773
        %v775 = vrot.slane %v746, 4
        %v776 = vsel %vm727, %v775, %v734
        %v777 = vrot.slane %v734, 4
        %v778 = vsel %vm727, %v746, %v777
        %v780 = vunpack.c.l.s4 1934713408
        %v781 = vunpack.c.0.s8 %v780
        %v782 = vperm.slane %v776, %v781
        %v784 = vunpack.c.l.s4 1934713408
        %v785 = vunpack.c.0.s8 %v784
        %v786 = vperm.slane %v778, %v785
        %v787 = vrot.slane %v750, 4
        %v788 = vsel %vm727, %v787, %v738
        %v789 = vrot.slane %v738, 4
        %v790 = vsel %vm727, %v750, %v789
        %v792 = vunpack.c.l.s4 1934713408
        %v793 = vunpack.c.0.s8 %v792
        %v794 = vperm.slane %v788, %v793
        %v796 = vunpack.c.l.s4 1934713408
        %v797 = vunpack.c.0.s8 %v796
        %v798 = vperm.slane %v790, %v797
        %v799 = vrot.slane %v770, 4
        %v800 = vsel %vm727, %v799, %v758
        %v801 = vrot.slane %v758, 4
        %v802 = vsel %vm727, %v770, %v801
        %v804 = vunpack.c.l.s4 1934713408
        %v805 = vunpack.c.0.s8 %v804
        %v806 = vperm.slane %v800, %v805
        %v808 = vunpack.c.l.s4 1934713408
        %v809 = vunpack.c.0.s8 %v808
        %v810 = vperm.slane %v802, %v809
        %v811 = vrot.slane %v774, 4
        %v812 = vsel %vm727, %v811, %v762
        %v813 = vrot.slane %v762, 4
        %v814 = vsel %vm727, %v774, %v813
        %v816 = vunpack.c.l.s4 1934713408
        %v817 = vunpack.c.0.s8 %v816
        %v818 = vperm.slane %v812, %v817
        %v820 = vunpack.c.l.s4 1934713408
        %v821 = vunpack.c.0.s8 %v820
        %v822 = vperm.slane %v814, %v821
        %v823 = vrot.slane %v806, 4
        %v824 = vsel %vm727, %v823, %v782
        %v825 = vrot.slane %v782, 4
        %v826 = vsel %vm727, %v806, %v825
        %v827 = vrot.slane %v810, 4
        %v828 = vsel %vm727, %v827, %v786
        %v829 = vrot.slane %v786, 4
        %v830 = vsel %vm727, %v810, %v829
        %v831 = vrot.slane %v818, 4
        %v832 = vsel %vm727, %v831, %v794
        %v833 = vrot.slane %v794, 4
        %v834 = vsel %vm727, %v818, %v833
        %v835 = vrot.slane %v822, 4
        %v836 = vsel %vm727, %v835, %v798
        %v837 = vrot.slane %v798, 4
        %v838 = vsel %vm727, %v822, %v837
        %v839 = vrot.slane %v715, 4
        %v840 = vsel %vm727, %v839, %v711
        %v841 = vrot.slane %v711, 4
        %v842 = vsel %vm727, %v715, %v841
        %v844 = vunpack.c.l.s4 1983009808
        %v845 = vunpack.c.0.s8 %v844
        %v846 = vperm.slane %v840, %v845
        %v848 = vunpack.c.l.s4 1983009808
        %v849 = vunpack.c.0.s8 %v848
        %v850 = vperm.slane %v842, %v849
        %v851 = vrot.slane %v717, 4
        %v852 = vsel %vm727, %v851, %v713
        %v853 = vrot.slane %v713, 4
        %v854 = vsel %vm727, %v717, %v853
        %v856 = vunpack.c.l.s4 1983009808
        %v857 = vunpack.c.0.s8 %v856
        %v858 = vperm.slane %v852, %v857
        %v860 = vunpack.c.l.s4 1983009808
        %v861 = vunpack.c.0.s8 %v860
        %v862 = vperm.slane %v854, %v861
        %v863 = vrot.slane %v723, 4
        %v864 = vsel %vm727, %v863, %v719
        %v865 = vrot.slane %v719, 4
        %v866 = vsel %vm727, %v723, %v865
        %v868 = vunpack.c.l.s4 1983009808
        %v869 = vunpack.c.0.s8 %v868
        %v870 = vperm.slane %v864, %v869
        %v872 = vunpack.c.l.s4 1983009808
        %v873 = vunpack.c.0.s8 %v872
        %v874 = vperm.slane %v866, %v873
        %v875 = vrot.slane %v725, 4
        %v876 = vsel %vm727, %v875, %v721
        %v877 = vrot.slane %v721, 4
        %v878 = vsel %vm727, %v725, %v877
        %v880 = vunpack.c.l.s4 1983009808
        %v881 = vunpack.c.0.s8 %v880
        %v882 = vperm.slane %v876, %v881
        %v884 = vunpack.c.l.s4 1983009808
        %v885 = vunpack.c.0.s8 %v884
        %v886 = vperm.slane %v878, %v885
        %v887 = vrot.slane %v858, 4
        %v888 = vsel %vm727, %v887, %v846
        %v889 = vrot.slane %v846, 4
        %v890 = vsel %vm727, %v858, %v889
        %v892 = vunpack.c.l.s4 1934713408
        %v893 = vunpack.c.0.s8 %v892
        %v894 = vperm.slane %v888, %v893
        %v896 = vunpack.c.l.s4 1934713408
        %v897 = vunpack.c.0.s8 %v896
        %v898 = vperm.slane %v890, %v897
        %v899 = vrot.slane %v862, 4
        %v900 = vsel %vm727, %v899, %v850
        %v901 = vrot.slane %v850, 4
        %v902 = vsel %vm727, %v862, %v901
        %v904 = vunpack.c.l.s4 1934713408
        %v905 = vunpack.c.0.s8 %v904
        %v906 = vperm.slane %v900, %v905
        %v908 = vunpack.c.l.s4 1934713408
        %v909 = vunpack.c.0.s8 %v908
        %v910 = vperm.slane %v902, %v909
        %v911 = vrot.slane %v882, 4
        %v912 = vsel %vm727, %v911, %v870
        %v913 = vrot.slane %v870, 4
        %v914 = vsel %vm727, %v882, %v913
        %v916 = vunpack.c.l.s4 1934713408
        %v917 = vunpack.c.0.s8 %v916
        %v918 = vperm.slane %v912, %v917
        %v920 = vunpack.c.l.s4 1934713408
        %v921 = vunpack.c.0.s8 %v920
        %v922 = vperm.slane %v914, %v921
        %v923 = vrot.slane %v886, 4
        %v924 = vsel %vm727, %v923, %v874
        %v925 = vrot.slane %v874, 4
        %v926 = vsel %vm727, %v886, %v925
        %v928 = vunpack.c.l.s4 1934713408
        %v929 = vunpack.c.0.s8 %v928
        %v930 = vperm.slane %v924, %v929
        %v932 = vunpack.c.l.s4 1934713408
        %v933 = vunpack.c.0.s8 %v932
        %v934 = vperm.slane %v926, %v933
        %v935 = vrot.slane %v918, 4
        %v936 = vsel %vm727, %v935, %v894
        %v937 = vrot.slane %v894, 4
        %v938 = vsel %vm727, %v918, %v937
        %v939 = vrot.slane %v922, 4
        %v940 = vsel %vm727, %v939, %v898
        %v941 = vrot.slane %v898, 4
        %v942 = vsel %vm727, %v922, %v941
        %v943 = vrot.slane %v930, 4
        %v944 = vsel %vm727, %v943, %v906
        %v945 = vrot.slane %v906, 4
        %v946 = vsel %vm727, %v930, %v945
        %v947 = vrot.slane %v934, 4
        %v948 = vsel %vm727, %v947, %v910
        %v949 = vrot.slane %v910, 4
        %v950 = vsel %vm727, %v934, %v949
        %952 = vrot.lane.b32.xlu0 %v826, 16
        %v953 = vpop.permute.xlu0 %952
        %956 = vrot.lane.b32.xlu0 %v828, 32
        %v957 = vpop.permute.xlu0 %956
        %960 = vrot.lane.b32.xlu0 %v830, 48
        %v961 = vpop.permute.xlu0 %960
        %964 = vrot.lane.b32.xlu0 %v832, 64
        %v965 = vpop.permute.xlu0 %964
        %968 = vrot.lane.b32.xlu0 %v834, 80
        %v969 = vpop.permute.xlu0 %968
        %972 = vrot.lane.b32.xlu0 %v836, 96
        %v973 = vpop.permute.xlu0 %972
        %976 = vrot.lane.b32.xlu0 %v838, 112
        %v977 = vpop.permute.xlu0 %976
        %980 = vrot.lane.b32.xlu0 %v938, 16
        %v981 = vpop.permute.xlu0 %980
        %984 = vrot.lane.b32.xlu0 %v940, 32
        %v985 = vpop.permute.xlu0 %984
        %988 = vrot.lane.b32.xlu0 %v942, 48
        %v989 = vpop.permute.xlu0 %988
        %992 = vrot.lane.b32.xlu0 %v944, 64
        %v993 = vpop.permute.xlu0 %992
        %996 = vrot.lane.b32.xlu0 %v946, 80
        %v997 = vpop.permute.xlu0 %996
        %1000 = vrot.lane.b32.xlu0 %v948, 96
        %v1001 = vpop.permute.xlu0 %1000
        %1004 = vrot.lane.b32.xlu0 %v950, 112
        %v1005 = vpop.permute.xlu0 %1004
        %v1007 = vsel %vm549, %v824, %v953
        %v1008 = vsel %vm203, %v1007, %v957
        %vm1009 = vcmask 392192
        %v1010 = vsel %vm1009, %v1008, %v961
        %vm1011 = vcmask 523264
        %v1012 = vsel %vm1011, %v1010, %v965
        %vm1013 = vcmask 654336
        %v1014 = vsel %vm1013, %v1012, %v969
        %vm1015 = vcmask 785408
        %v1016 = vsel %vm1015, %v1014, %v973
        %vm1017 = vcmask 916480
        %v1018 = vsel %vm1017, %v1016, %v977
        %v1019 = vsel %vm549, %v936, %v981
        %v1020 = vsel %vm203, %v1019, %v985
        %v1021 = vsel %vm1009, %v1020, %v989
        %v1022 = vsel %vm1011, %v1021, %v993
        %v1023 = vsel %vm1013, %v1022, %v997
        %v1024 = vsel %vm1015, %v1023, %v1001
        %v1025 = vsel %vm1017, %v1024, %v1005
        %1026 = vst [vmem:[%s181] sm:$0xff] %v1018
        %1027 = vst [vmem:[%s181 + $0x8] sm:$0xff] %v1025
        %s1028 = sand.u32 %s75, 1
        %s1029 = scalar_lea.sflag [#allocation4], %s1028
        %s1030 = sand.u32 %s75, 1
        %s1031 = smul.addr %s1030, 16
        %s1032 = scalar_lea.vmem [#allocation7], %s1031
        // Predicated region
        $region37: #{tpu_custom_call.1} parent=27 // pred_check
          %p1033 = pneg %p85
        $region38: #{tpu_custom_call.1} parent=27 // pred_check_branch
          %1035 = sbr.rel (%p1033) target = $region40
        $region39: #{tpu_custom_call.1} parent=27 // pred_region
          %1037 = vsyncadd %s1029, 0
          %s1038 = smul.addr %s20, 2
          %s1039 = smul.addr %s1038, 8
          %s1040 = scalar_lea.hbm %s2, %s1039
          %s1042 = sshll.u32 %s1032, 4
          %s1043 = int_to_ptr.vmem [resolvable:$true] %s1042
          %s1044 = sshll.u32 %s1040, 4
          %s1045 = int_to_ptr.hbm [resolvable:$true] %s1044
          %1047 = dma.vmem_to_hbm [thread:$0]  %s1043, 256, %s1045, %s1029
        $region40: #{tpu_custom_call.1} parent=27 // pred_fallthru
          _
      $region28: #{tpu_custom_call.1} parent=5 // pred_fallthru
        _
      %p1048 = scmp.le.s32.totalorder 2, %s15
      // Predicated region
      $region41: #{tpu_custom_call.1} parent=5 // pred_check
        %p1049 = pneg %p1048
      $region42: #{tpu_custom_call.1} parent=5 // pred_check_branch
        %1051 = sbr.rel (%p1049) target = $region44
      $region43: #{tpu_custom_call.1} parent=5 // pred_region
        %s1052 = ssub.s32 %s15, 2
        // Predicated region
        $region45: #{tpu_custom_call.1} parent=43 // pred_check
          %p1053 = pneg %p91
        $region46: #{tpu_custom_call.1} parent=43 // pred_check_branch
          %1055 = sbr.rel (%p1053) target = $region48
        $region47: #{tpu_custom_call.1} parent=43 // pred_region
          %s1056 = sand.u32 %s76, 1
          %s1057 = scalar_lea.sflag [#allocation4], %s1056
          %s1058 = sand.u32 %s76, 1
          %s1059 = smul.addr %s1058, 16
          %s1060 = scalar_lea.vmem [#allocation7], %s1059
          %1062 = dma.done %s1057, 256
        $region48: #{tpu_custom_call.1} parent=43 // pred_fallthru
          _
      $region44: #{tpu_custom_call.1} parent=5 // pred_fallthru
        _
    $region6: #{tpu_custom_call.1} parent=1 // loop_footer
      %s19 = sadd.s32 1, %s15
    $region7: #{tpu_custom_call.1} parent=1 // loop_footer_branch
      %14 = sbr.rel target = $region3
    $region8: #{tpu_custom_call.1} parent=1 // loop_exit
      _
    %1063 = vsyncpa [#allocation3], 1
    %s1064 = scalar_lea.sflag [#allocation3], 1
    %1065 = vsyncpa %s1064, 1
    %1066 = vsyncpa [#allocation6], 1
    %1067 = vsyncpa [#allocation4], 1
    %s1068 = scalar_lea.sflag [#allocation4], 1
    %1069 = vsyncpa %s1068, 1

</llo_original>
